<compile_context>
chip_gen: v5e
topology: v5e:2x2
jax: 0.10.0
libtpu: 0.0.40
codegen_flags: <defaults>
</compile_context>

<pallas_src>
import functools

import jax
import jax.numpy as jnp
from jax import lax
from jax.experimental import pallas as pl
from jax.experimental.pallas import tpu as pltpu

IGNORE_LABEL = 255
FP_RATIO = 0.1
LOSS_WEIGHT = 1.0

_PAD_LABEL = -1          # sentinel for padded pixels (distinct from IGNORE)
_SPATIAL_SPLIT = 2       # size-2 parallel spatial axis (dual-TC on v7x)
_MAX_TILE = 65536        # upper cap on the spatial tile (elements)


def _round_up(x, m):
    return ((x + m - 1) // m) * m


def _vmem_limits():
    """Generation-aware (conservative) scoped-VMEM limit and tile budget."""
    phys = 64 * 1024 * 1024          # assume the smallest (v7x per-core) on failure
    try:
        phys = int(pltpu.get_tpu_info().vmem_capacity_bytes)
    except Exception:
        pass
    limit = max(32 * 1024 * 1024, min(phys // 2, 48 * 1024 * 1024))
    return limit, limit // 2


def _choose_tile(hw, channels, score_itemsize, target_itemsize, tile_budget):
    """Largest multiple-of-128 tile fitting the VMEM budget (per half-image)."""
    # Double-buffered score/target/logp blocks plus ~six live (C, tile) f32
    # temporaries inside the kernel body.
    per_elem = 2 * (channels * score_itemsize + target_itemsize + 4) + 6 * 4 * channels
    tile = tile_budget // max(per_elem, 1)
    half = _round_up(-(-hw // _SPATIAL_SPLIT), 128)
    tile = min(tile, _MAX_TILE, half)
    tile = max(128, (tile // 128) * 128)
    return tile


# --------------------------------------------------------------------------
# Pass A: per-pixel log-softmax gather + fused per-(image, class) statistics
# --------------------------------------------------------------------------
def _pixel_stats_kernel(score_ref, target_ref, logp_ref, stats_ref, acc_ref,
                        *, num_classes):
    C = num_classes
    t_idx = pl.program_id(2)

    @pl.when(t_idx == 0)
    def _init():
        acc_ref[...] = jnp.zeros_like(acc_ref)

    s = score_ref[0].astype(jnp.float32)          # (C, TILE); cast in VMEM
    tgt = target_ref[0].astype(jnp.int32)         # (1, TILE)

    notpad = tgt != _PAD_LABEL
    valid = notpad & (tgt != IGNORE_LABEL)
    validf = valid.astype(jnp.float32)
    notpadf = notpad.astype(jnp.float32)
    label = jnp.where(valid, tgt, 0)              # ignore/pad -> class 0 (like ref)

    cls = lax.broadcasted_iota(jnp.int32, s.shape, 0)          # (C, TILE)
    m_lbl = (cls == label).astype(jnp.float32)                 # GT one-hot

    # log-softmax over classes (axis 0): exp/log on EUP, no divide, no -log(0).
    smax = jnp.max(s, axis=0, keepdims=True)                   # (1, TILE)
    lse = smax + jnp.log(jnp.sum(jnp.exp(s - smax), axis=0, keepdims=True))
    gathered = jnp.sum(m_lbl * s, axis=0, keepdims=True)       # logit at GT class
    logp = gathered - lse                                      # <= 0
    log_ = -logp                                               # >= 0
    pred = jnp.exp(logp)                                       # softmax prob at GT

    # argmax over classes (first-max tie break, like torch.argmax); never hits HBM.
    pm = jnp.min(jnp.where(s == smax, cls, C), axis=0, keepdims=True)
    m_pm = (cls == pm).astype(jnp.float32)
    roi = m_pm * (1.0 - m_lbl)            # pred_mask == c  &  label != c

    nz = log_ != 0.0
    vnz = (valid & nz).astype(jnp.float32)
    vlog = vnz * log_

    # Per-class lane reductions, accumulated into small VMEM scratch rows
    # (no per-step lane concatenate).  Kept on VPU/XLU on purpose: an MXU
    # contraction here would stream the TILE-long contraction dim through
    # weight loads for <=8 output columns and cost more than it saves.
    acc_ref[0] += jnp.sum(m_lbl * vlog, axis=1, keepdims=True)     # inst_sum
    acc_ref[1] += jnp.sum(m_lbl * vnz, axis=1, keepdims=True)      # inst_cnt
    acc_ref[2] += jnp.sum(m_lbl * notpadf, axis=1, keepdims=True)  # lbl_cnt
    acc_ref[3] += jnp.sum(roi * vlog, axis=1, keepdims=True)       # fp_sum
    acc_ref[4] += jnp.sum(roi * vnz, axis=1, keepdims=True)        # fp_cnt
    acc_ref[5] += jnp.sum(roi * notpadf, axis=1, keepdims=True)    # roi_cnt
    acc_ref[6] += jnp.sum(jnp.where(valid, pred, 0.0), axis=1, keepdims=True)
    acc_ref[7] += jnp.sum(validf, axis=1, keepdims=True)

    # gathered log-prob; invalid/padded pixels get +1.0 so they are never
    # selected by the OHEM pass (its threshold is log(prob) <= 0).
    logp_ref[0] = jnp.where(valid, logp, 1.0)

    @pl.when(t_idx == pl.num_programs(2) - 1)
    def _finalize():
        cols = [acc_ref[j] for j in range(8)]                      # 8 x (C, 1)
        packed = jnp.concatenate(
            cols + [jnp.zeros((C, 120), jnp.float32)], axis=1)     # (C, 128)
        stats_ref[...] = packed[None, None]


def _pixel_stats_pass(score2, target2, tile, split, t2, vmem_limit):
    N, C, HWp = score2.shape
    kernel = functools.partial(_pixel_stats_kernel, num_classes=C)
    return pl.pallas_call(
        kernel,
        out_shape=(
            jax.ShapeDtypeStruct((N, 1, HWp), jnp.float32),          # gathered log-prob
            jax.ShapeDtypeStruct((N, split, C, 128), jnp.float32),   # fused statistics
        ),
        grid_spec=pltpu.PrefetchScalarGridSpec(
            num_scalar_prefetch=0,
            grid=(N, split, t2),
            in_specs=[
                pl.BlockSpec((1, C, tile), lambda n, h, t: (n, 0, h * t2 + t)),
                pl.BlockSpec((1, 1, tile), lambda n, h, t: (n, 0, h * t2 + t)),
            ],
            out_specs=[
                pl.BlockSpec((1, 1, tile), lambda n, h, t: (n, 0, h * t2 + t)),
                pl.BlockSpec((1, 1, C, 128), lambda n, h, t: (n, h, 0, 0)),
            ],
            scratch_shapes=[pltpu.VMEM((8, C, 1), jnp.float32)],
        ),
        compiler_params=pltpu.CompilerParams(
            dimension_semantics=("parallel", "parallel", "arbitrary"),
            vmem_limit_bytes=vmem_limit,
        ),
    )(score2, target2)


# --------------------------------------------------------------------------
# Pass B: OHEM selection in log space against log(threshold)
# --------------------------------------------------------------------------
def _ohem_kernel(logthr_ref, logp_ref, acc_ref):
    t_idx = pl.program_id(2)

    @pl.when(t_idx == 0)
    def _init():
        acc_ref[...] = jnp.zeros_like(acc_ref)

    log_thr = logthr_ref[0, 0]                 # scalar log-threshold from SMEM
    lp = logp_ref[0]                           # (1, TILE); invalid sentinel = +1.0
    sel = lp < log_thr                         # sentinel excluded (log_thr <= 0)
    osum = jnp.sum(jnp.where(sel, -lp, 0.0), axis=1, keepdims=True)
    ocnt = jnp.sum(sel.astype(jnp.float32), axis=1, keepdims=True)
    acc_ref[...] += jnp.concatenate([osum, ocnt], axis=1)[None, None]


def _ohem_pass(logp, log_thr, tile, split, t2, vmem_limit):
    N, _, HWp = logp.shape
    thr_arr = jnp.asarray(log_thr, jnp.float32).reshape(1, 1)
    return pl.pallas_call(
        _ohem_kernel,
        out_shape=jax.ShapeDtypeStruct((N, split, 1, 2), jnp.float32),
        grid_spec=pltpu.PrefetchScalarGridSpec(
            num_scalar_prefetch=0,
            grid=(N, split, t2),
            in_specs=[
                pl.BlockSpec(memory_space=pltpu.MemorySpace.SMEM),   # log-threshold
                pl.BlockSpec((1, 1, tile), lambda n, h, t: (n, 0, h * t2 + t)),
            ],
            out_specs=pl.BlockSpec((1, 1, 1, 2), lambda n, h, t: (n, h, 0, 0)),
        ),
        compiler_params=pltpu.CompilerParams(
            dimension_semantics=("parallel", "parallel", "arbitrary"),
            vmem_limit_bytes=vmem_limit,
        ),
    )(thr_arr, logp)


# --------------------------------------------------------------------------
# BlobLoss forward
# --------------------------------------------------------------------------
def blob_loss(score, target, fp_ratio=FP_RATIO, loss_weight=LOSS_WEIGHT,
              class_weight=None):
    N, C, H, W = score.shape
    HW = H * W
    S = _SPATIAL_SPLIT

    vmem_limit, tile_budget = _vmem_limits()
    tile = _choose_tile(HW, C, jnp.dtype(score.dtype).itemsize,
                        jnp.dtype(target.dtype).itemsize, tile_budget)
    t2 = -(-HW // (S * tile))                 # cdiv over (split * tile)
    HWp = S * t2 * tile
    pad = HWp - HW

    # Lane-dense layouts in NATIVE dtypes (no HBM-materializing casts here).
    score2 = score.reshape(N, C, HW)
    target2 = target.reshape(N, 1, HW)
    if pad:
        score2 = jnp.pad(score2, ((0, 0), (0, 0), (0, pad)))
        target2 = jnp.pad(target2, ((0, 0), (0, 0), (0, pad)),
                          constant_values=_PAD_LABEL)

    logp, stats = _pixel_stats_pass(score2, target2, tile, S, t2, vmem_limit)
    stats = jnp.sum(stats, axis=1)            # fold spatial-split halves -> (N, C, 128)

    inst_sum = stats[:, :, 0]
    inst_cnt = stats[:, :, 1]
    lbl_cnt = stats[:, :, 2]
    fp_sum = stats[:, :, 3]
    fp_cnt = stats[:, :, 4]
    roi_cnt = stats[:, :, 5]
    vsum = jnp.sum(stats[:, 0, 6])
    vcnt = jnp.sum(stats[:, 0, 7])

    # OHEM threshold = mean of valid GT-probs (the reference sorts then takes
    # the mean, which is permutation invariant).  Compare in log space.
    thr = vsum / jnp.maximum(vcnt, 1.0)
    log_thr = jnp.log(thr)
    parts = _ohem_pass(logp, log_thr, tile, S, t2, vmem_limit)   # (N, S, 1, 2)
    osum = jnp.sum(parts[..., 0])
    ocnt = jnp.sum(parts[..., 1])
    ohem = osum / jnp.maximum(ocnt, 1.0)

    if class_weight is None:
        cw = jnp.ones((C,), jnp.float32)
    else:
        cw = jnp.asarray(class_weight, jnp.float32)

    # classes present per image; skip the smallest present id (cls_ids[1:])
    cls_range = jnp.arange(C)
    present = lbl_cnt > 0.0                                          # (N, C)
    min_present = jnp.min(jnp.where(present, cls_range[None, :], C), axis=1)
    used = present & (cls_range[None, :] != min_present[:, None])
    num_present = jnp.sum(present.astype(jnp.int32), axis=1)
    denom = jnp.maximum(num_present - 1, 1).astype(jnp.float32)      # max(len-1, 1)

    inst_mean = jnp.where(inst_cnt > 0, inst_sum / jnp.maximum(inst_cnt, 1.0), 0.0)
    inst_mean = jnp.maximum(inst_mean, 0.0)                          # max(mean, 0)
    instance_loss = jnp.sum(jnp.where(used, inst_mean * cw[None, :], 0.0), axis=1)

    fp_mean = jnp.where(fp_cnt > 0, fp_sum / jnp.maximum(fp_cnt, 1.0), 0.0)
    # reference weights every false-positive term by class_weight[0]
    fp_contrib = jnp.where(used & (roi_cnt > 0), fp_mean * cw[0], 0.0)
    fp_loss = jnp.sum(fp_contrib, axis=1)

    blob = jnp.sum((instance_loss + fp_loss * fp_ratio) / denom)
    total = ohem + blob / N
    return loss_weight * total


if __name__ == "__main__":
    key = jax.random.PRNGKey(0)
    N, C, H, W = 2, 4, 16, 16
    k1, k2, k3 = jax.random.split(key, 3)

    # native bf16 scores / int32 targets flow straight into the kernels
    score = jax.random.normal(k1, (N, C, H, W), dtype=jnp.bfloat16)
    target = jax.random.randint(k2, (N, H, W), 0, C).astype(jnp.int32)
    ignore_mask = jax.random.bernoulli(k3, 0.1, (N, H, W))
    target = jnp.where(ignore_mask, IGNORE_LABEL, target).astype(jnp.int32)

    loss = jax.jit(blob_loss)(score, target)
    loss = jax.block_until_ready(loss)
    assert bool(jnp.isfinite(loss)), "loss is not finite"
    print("KERNEL_OK")
</pallas_src>

<mosaic_0001>
module attributes {stable_mosaic.version = 11 : i64} {
  func.func @_pixel_stats_kernel(%arg0: i32, %arg1: i32, %arg2: i32, %arg3: memref<1x4x128xbf16, #tpu.memory_space<vmem>>, %arg4: memref<1x1x128xi32, #tpu.memory_space<vmem>>, %arg5: memref<1x1x128xf32, #tpu.memory_space<vmem>>, %arg6: memref<1x1x4x128xf32, #tpu.memory_space<vmem>>, %arg7: memref<8x4x1xf32, #tpu.memory_space<vmem>>) attributes {dimension_semantics = [#tpu.dimension_semantics<parallel>, #tpu.dimension_semantics<parallel>, #tpu.dimension_semantics<arbitrary>], iteration_bounds = array<i64: 2, 2, 1>, scalar_prefetch = 0 : i64, scratch_operands = 1 : i64, tpu.core_type = #tpu.core_type<tc>, window_params = [{transform_indices = @transform_0, window_bounds = array<i64: 1, 4, 128>}, {transform_indices = @transform_1, window_bounds = array<i64: 1, 1, 128>}, {transform_indices = @transform_2, window_bounds = array<i64: 1, 1, 128>}, {transform_indices = @transform_3, window_bounds = array<i64: 1, 1, 4, 128>}]} {
    %c0_i32 = arith.constant 0 : i32
    %0 = arith.cmpi eq, %arg2, %c0_i32 : i32
    %1 = arith.extui %0 : i1 to i32
    %c0_i32_0 = arith.constant 0 : i32
    %2 = arith.cmpi ne, %1, %c0_i32_0 : i32
    scf.if %2 {
      %cst_69 = arith.constant 0.000000e+00 : f32
      %147 = vector.broadcast %cst_69 : f32 to vector<8x4x1xf32>
      %c0_70 = arith.constant 0 : index
      %c0_71 = arith.constant 0 : index
      %c0_72 = arith.constant 0 : index
      %148 = vector.load %arg7[%c0_70, %c0_71, %c0_72] : memref<8x4x1xf32, #tpu.memory_space<vmem>>, vector<8x4x1xf32>
      tpu.vector_store %arg7[%c0_70, %c0_71, %c0_72], %147 {strides = array<i32>} : memref<8x4x1xf32, #tpu.memory_space<vmem>>, vector<8x4x1xf32>,
    } else {
    }
    %c0 = arith.constant 0 : index
    %c0_1 = arith.constant 0 : index
    %c0_2 = arith.constant 0 : index
    %3 = vector.load %arg3[%c0, %c0_1, %c0_2] : memref<1x4x128xbf16, #tpu.memory_space<vmem>>, vector<1x4x128xbf16>
    %4 = vector.shape_cast %3 : vector<1x4x128xbf16> to vector<4x128xbf16>
    %5 = arith.extf %4 : vector<4x128xbf16> to vector<4x128xf32>
    %c0_3 = arith.constant 0 : index
    %c0_4 = arith.constant 0 : index
    %c0_5 = arith.constant 0 : index
    %6 = vector.load %arg4[%c0_3, %c0_4, %c0_5] : memref<1x1x128xi32, #tpu.memory_space<vmem>>, vector<1x1x128xi32>
    %7 = vector.shape_cast %6 : vector<1x1x128xi32> to vector<1x128xi32>
    %c-1_i32 = arith.constant -1 : i32
    %8 = vector.broadcast %c-1_i32 : i32 to vector<1x128xi32>
    %9 = arith.cmpi ne, %7, %8 : vector<1x128xi32>
    %c255_i32 = arith.constant 255 : i32
    %10 = vector.broadcast %c255_i32 : i32 to vector<1x128xi32>
    %11 = arith.cmpi ne, %7, %10 : vector<1x128xi32>
    %12 = arith.andi %9, %11 : vector<1x128xi1>
    %13 = arith.extui %12 : vector<1x128xi1> to vector<1x128xi32>
    %14 = arith.sitofp %13 : vector<1x128xi32> to vector<1x128xf32>
    %15 = arith.extui %9 : vector<1x128xi1> to vector<1x128xi32>
    %16 = arith.sitofp %15 : vector<1x128xi32> to vector<1x128xf32>
    %c0_i32_6 = arith.constant 0 : i32
    %17 = vector.broadcast %c0_i32_6 : i32 to vector<1x128xi32>
    %18 = arith.select %12, %7, %17 : vector<1x128xi1>, vector<1x128xi32>
    %19 = tpu.iota {dimensions = array<i32: 0>} : vector<4x128xi32>
    %20 = vector.broadcast %18 : vector<1x128xi32> to vector<4x128xi32>
    %21 = arith.cmpi eq, %19, %20 : vector<4x128xi32>
    %22 = arith.extui %21 : vector<4x128xi1> to vector<4x128xi32>
    %23 = arith.sitofp %22 : vector<4x128xi32> to vector<4x128xf32>
    %cst = arith.constant dense<0xFF800000> : vector<128xf32>
    %24 = vector.multi_reduction <maximumf>, %5, %cst [0] : vector<4x128xf32> to vector<128xf32>
    %25 = vector.shape_cast %24 : vector<128xf32> to vector<1x128xf32>
    %26 = vector.broadcast %25 : vector<1x128xf32> to vector<4x128xf32>
    %27 = arith.subf %5, %26 : vector<4x128xf32>
    %28 = math.exp %27 : vector<4x128xf32>
    %cst_7 = arith.constant dense<0.000000e+00> : vector<128xf32>
    %29 = vector.multi_reduction <add>, %28, %cst_7 [0] : vector<4x128xf32> to vector<128xf32>
    %30 = vector.shape_cast %29 : vector<128xf32> to vector<1x128xf32>
    %31 = math.log %30 : vector<1x128xf32>
    %32 = arith.addf %25, %31 : vector<1x128xf32>
    %33 = arith.mulf %23, %5 : vector<4x128xf32>
    %cst_8 = arith.constant dense<0.000000e+00> : vector<128xf32>
    %34 = vector.multi_reduction <add>, %33, %cst_8 [0] : vector<4x128xf32> to vector<128xf32>
    %35 = vector.shape_cast %34 : vector<128xf32> to vector<1x128xf32>
    %36 = arith.subf %35, %32 : vector<1x128xf32>
    %cst_9 = arith.constant 0.000000e+00 : f32
    %37 = vector.broadcast %cst_9 : f32 to vector<1x128xf32>
    %38 = arith.subf %37, %36 : vector<1x128xf32>
    %39 = math.exp %36 : vector<1x128xf32>
    %40 = vector.broadcast %25 : vector<1x128xf32> to vector<4x128xf32>
    %41 = arith.cmpf oeq, %5, %40 : vector<4x128xf32>
    %c4_i32 = arith.constant 4 : i32
    %42 = vector.broadcast %c4_i32 : i32 to vector<4x128xi32>
    %43 = arith.select %41, %19, %42 : vector<4x128xi1>, vector<4x128xi32>
    %cst_10 = arith.constant dense<2147483647> : vector<128xi32>
    %44 = vector.multi_reduction <minsi>, %43, %cst_10 [0] : vector<4x128xi32> to vector<128xi32>
    %45 = vector.shape_cast %44 : vector<128xi32> to vector<1x128xi32>
    %46 = vector.broadcast %45 : vector<1x128xi32> to vector<4x128xi32>
    %47 = arith.cmpi eq, %19, %46 : vector<4x128xi32>
    %48 = arith.extui %47 : vector<4x128xi1> to vector<4x128xi32>
    %49 = arith.sitofp %48 : vector<4x128xi32> to vector<4x128xf32>
    %cst_11 = arith.constant 1.000000e+00 : f32
    %50 = vector.broadcast %cst_11 : f32 to vector<4x128xf32>
    %51 = arith.subf %50, %23 : vector<4x128xf32>
    %52 = arith.mulf %49, %51 : vector<4x128xf32>
    %cst_12 = arith.constant 0.000000e+00 : f32
    %53 = vector.broadcast %cst_12 : f32 to vector<1x128xf32>
    %54 = arith.cmpf one, %38, %53 : vector<1x128xf32>
    %55 = arith.andi %12, %54 : vector<1x128xi1>
    %56 = arith.extui %55 : vector<1x128xi1> to vector<1x128xi32>
    %57 = arith.sitofp %56 : vector<1x128xi32> to vector<1x128xf32>
    %58 = arith.mulf %57, %38 : vector<1x128xf32>
    %c0_13 = arith.constant 0 : index
    %c0_14 = arith.constant 0 : index
    %c0_15 = arith.constant 0 : index
    %59 = vector.load %arg7[%c0_13, %c0_14, %c0_15] : memref<8x4x1xf32, #tpu.memory_space<vmem>>, vector<1x4x1xf32>
    %60 = vector.shape_cast %59 : vector<1x4x1xf32> to vector<4x1xf32>
    %61 = vector.broadcast %58 : vector<1x128xf32> to vector<4x128xf32>
    %62 = arith.mulf %23, %61 : vector<4x128xf32>
    %cst_16 = arith.constant dense<0.000000e+00> : vector<4xf32>
    %63 = vector.multi_reduction <add>, %62, %cst_16 [1] : vector<4x128xf32> to vector<4xf32>
    %64 = vector.shape_cast %63 : vector<4xf32> to vector<4x1xf32>
    %65 = arith.addf %60, %64 : vector<4x1xf32>
    %c0_17 = arith.constant 0 : index
    %c0_18 = arith.constant 0 : index
    %c0_19 = arith.constant 0 : index
    %66 = vector.load %arg7[%c0_17, %c0_18, %c0_19] : memref<8x4x1xf32, #tpu.memory_space<vmem>>, vector<1x4x1xf32>
    %67 = vector.shape_cast %66 : vector<1x4x1xf32> to vector<4x1xf32>
    %68 = vector.shape_cast %65 : vector<4x1xf32> to vector<1x4x1xf32>
    tpu.vector_store %arg7[%c0_17, %c0_18, %c0_19], %68 {strides = array<i32>} : memref<8x4x1xf32, #tpu.memory_space<vmem>>, vector<1x4x1xf32>,
    %c1 = arith.constant 1 : index
    %c0_20 = arith.constant 0 : index
    %c0_21 = arith.constant 0 : index
    %69 = vector.load %arg7[%c1, %c0_20, %c0_21] : memref<8x4x1xf32, #tpu.memory_space<vmem>>, vector<1x4x1xf32>
    %70 = vector.shape_cast %69 : vector<1x4x1xf32> to vector<4x1xf32>
    %71 = vector.broadcast %57 : vector<1x128xf32> to vector<4x128xf32>
    %72 = arith.mulf %23, %71 : vector<4x128xf32>
    %cst_22 = arith.constant dense<0.000000e+00> : vector<4xf32>
    %73 = vector.multi_reduction <add>, %72, %cst_22 [1] : vector<4x128xf32> to vector<4xf32>
    %74 = vector.shape_cast %73 : vector<4xf32> to vector<4x1xf32>
    %75 = arith.addf %70, %74 : vector<4x1xf32>
    %c1_23 = arith.constant 1 : index
    %c0_24 = arith.constant 0 : index
    %c0_25 = arith.constant 0 : index
    %76 = vector.load %arg7[%c1_23, %c0_24, %c0_25] : memref<8x4x1xf32, #tpu.memory_space<vmem>>, vector<1x4x1xf32>
    %77 = vector.shape_cast %76 : vector<1x4x1xf32> to vector<4x1xf32>
    %78 = vector.shape_cast %75 : vector<4x1xf32> to vector<1x4x1xf32>
    tpu.vector_store %arg7[%c1_23, %c0_24, %c0_25], %78 {strides = array<i32>} : memref<8x4x1xf32, #tpu.memory_space<vmem>>, vector<1x4x1xf32>,
    %c2 = arith.constant 2 : index
    %c0_26 = arith.constant 0 : index
    %c0_27 = arith.constant 0 : index
    %79 = vector.load %arg7[%c2, %c0_26, %c0_27] : memref<8x4x1xf32, #tpu.memory_space<vmem>>, vector<1x4x1xf32>
    %80 = vector.shape_cast %79 : vector<1x4x1xf32> to vector<4x1xf32>
    %81 = vector.broadcast %16 : vector<1x128xf32> to vector<4x128xf32>
    %82 = arith.mulf %23, %81 : vector<4x128xf32>
    %cst_28 = arith.constant dense<0.000000e+00> : vector<4xf32>
    %83 = vector.multi_reduction <add>, %82, %cst_28 [1] : vector<4x128xf32> to vector<4xf32>
    %84 = vector.shape_cast %83 : vector<4xf32> to vector<4x1xf32>
    %85 = arith.addf %80, %84 : vector<4x1xf32>
    %c2_29 = arith.constant 2 : index
    %c0_30 = arith.constant 0 : index
    %c0_31 = arith.constant 0 : index
    %86 = vector.load %arg7[%c2_29, %c0_30, %c0_31] : memref<8x4x1xf32, #tpu.memory_space<vmem>>, vector<1x4x1xf32>
    %87 = vector.shape_cast %86 : vector<1x4x1xf32> to vector<4x1xf32>
    %88 = vector.shape_cast %85 : vector<4x1xf32> to vector<1x4x1xf32>
    tpu.vector_store %arg7[%c2_29, %c0_30, %c0_31], %88 {strides = array<i32>} : memref<8x4x1xf32, #tpu.memory_space<vmem>>, vector<1x4x1xf32>,
    %c3 = arith.constant 3 : index
    %c0_32 = arith.constant 0 : index
    %c0_33 = arith.constant 0 : index
    %89 = vector.load %arg7[%c3, %c0_32, %c0_33] : memref<8x4x1xf32, #tpu.memory_space<vmem>>, vector<1x4x1xf32>
    %90 = vector.shape_cast %89 : vector<1x4x1xf32> to vector<4x1xf32>
    %91 = vector.broadcast %58 : vector<1x128xf32> to vector<4x128xf32>
    %92 = arith.mulf %52, %91 : vector<4x128xf32>
    %cst_34 = arith.constant dense<0.000000e+00> : vector<4xf32>
    %93 = vector.multi_reduction <add>, %92, %cst_34 [1] : vector<4x128xf32> to vector<4xf32>
    %94 = vector.shape_cast %93 : vector<4xf32> to vector<4x1xf32>
    %95 = arith.addf %90, %94 : vector<4x1xf32>
    %c3_35 = arith.constant 3 : index
    %c0_36 = arith.constant 0 : index
    %c0_37 = arith.constant 0 : index
    %96 = vector.load %arg7[%c3_35, %c0_36, %c0_37] : memref<8x4x1xf32, #tpu.memory_space<vmem>>, vector<1x4x1xf32>
    %97 = vector.shape_cast %96 : vector<1x4x1xf32> to vector<4x1xf32>
    %98 = vector.shape_cast %95 : vector<4x1xf32> to vector<1x4x1xf32>
    tpu.vector_store %arg7[%c3_35, %c0_36, %c0_37], %98 {strides = array<i32>} : memref<8x4x1xf32, #tpu.memory_space<vmem>>, vector<1x4x1xf32>,
    %c4 = arith.constant 4 : index
    %c0_38 = arith.constant 0 : index
    %c0_39 = arith.constant 0 : index
    %99 = vector.load %arg7[%c4, %c0_38, %c0_39] : memref<8x4x1xf32, #tpu.memory_space<vmem>>, vector<1x4x1xf32>
    %100 = vector.shape_cast %99 : vector<1x4x1xf32> to vector<4x1xf32>
    %101 = vector.broadcast %57 : vector<1x128xf32> to vector<4x128xf32>
    %102 = arith.mulf %52, %101 : vector<4x128xf32>
    %cst_40 = arith.constant dense<0.000000e+00> : vector<4xf32>
    %103 = vector.multi_reduction <add>, %102, %cst_40 [1] : vector<4x128xf32> to vector<4xf32>
    %104 = vector.shape_cast %103 : vector<4xf32> to vector<4x1xf32>
    %105 = arith.addf %100, %104 : vector<4x1xf32>
    %c4_41 = arith.constant 4 : index
    %c0_42 = arith.constant 0 : index
    %c0_43 = arith.constant 0 : index
    %106 = vector.load %arg7[%c4_41, %c0_42, %c0_43] : memref<8x4x1xf32, #tpu.memory_space<vmem>>, vector<1x4x1xf32>
    %107 = vector.shape_cast %106 : vector<1x4x1xf32> to vector<4x1xf32>
    %108 = vector.shape_cast %105 : vector<4x1xf32> to vector<1x4x1xf32>
    tpu.vector_store %arg7[%c4_41, %c0_42, %c0_43], %108 {strides = array<i32>} : memref<8x4x1xf32, #tpu.memory_space<vmem>>, vector<1x4x1xf32>,
    %c5 = arith.constant 5 : index
    %c0_44 = arith.constant 0 : index
    %c0_45 = arith.constant 0 : index
    %109 = vector.load %arg7[%c5, %c0_44, %c0_45] : memref<8x4x1xf32, #tpu.memory_space<vmem>>, vector<1x4x1xf32>
    %110 = vector.shape_cast %109 : vector<1x4x1xf32> to vector<4x1xf32>
    %111 = vector.broadcast %16 : vector<1x128xf32> to vector<4x128xf32>
    %112 = arith.mulf %52, %111 : vector<4x128xf32>
    %cst_46 = arith.constant dense<0.000000e+00> : vector<4xf32>
    %113 = vector.multi_reduction <add>, %112, %cst_46 [1] : vector<4x128xf32> to vector<4xf32>
    %114 = vector.shape_cast %113 : vector<4xf32> to vector<4x1xf32>
    %115 = arith.addf %110, %114 : vector<4x1xf32>
    %c5_47 = arith.constant 5 : index
    %c0_48 = arith.constant 0 : index
    %c0_49 = arith.constant 0 : index
    %116 = vector.load %arg7[%c5_47, %c0_48, %c0_49] : memref<8x4x1xf32, #tpu.memory_space<vmem>>, vector<1x4x1xf32>
    %117 = vector.shape_cast %116 : vector<1x4x1xf32> to vector<4x1xf32>
    %118 = vector.shape_cast %115 : vector<4x1xf32> to vector<1x4x1xf32>
    tpu.vector_store %arg7[%c5_47, %c0_48, %c0_49], %118 {strides = array<i32>} : memref<8x4x1xf32, #tpu.memory_space<vmem>>, vector<1x4x1xf32>,
    %c6 = arith.constant 6 : index
    %c0_50 = arith.constant 0 : index
    %c0_51 = arith.constant 0 : index
    %119 = vector.load %arg7[%c6, %c0_50, %c0_51] : memref<8x4x1xf32, #tpu.memory_space<vmem>>, vector<1x4x1xf32>
    %120 = vector.shape_cast %119 : vector<1x4x1xf32> to vector<4x1xf32>
    %cst_52 = arith.constant 0.000000e+00 : f32
    %121 = vector.broadcast %cst_52 : f32 to vector<1x128xf32>
    %122 = arith.select %12, %39, %121 : vector<1x128xi1>, vector<1x128xf32>
    %cst_53 = arith.constant dense<0.000000e+00> : vector<1xf32>
    %123 = vector.multi_reduction <add>, %122, %cst_53 [1] : vector<1x128xf32> to vector<1xf32>
    %124 = vector.shape_cast %123 : vector<1xf32> to vector<1x1xf32>
    %125 = vector.broadcast %124 : vector<1x1xf32> to vector<4x1xf32>
    %126 = arith.addf %120, %125 : vector<4x1xf32>
    %c6_54 = arith.constant 6 : index
    %c0_55 = arith.constant 0 : index
    %c0_56 = arith.constant 0 : index
    %127 = vector.load %arg7[%c6_54, %c0_55, %c0_56] : memref<8x4x1xf32, #tpu.memory_space<vmem>>, vector<1x4x1xf32>
    %128 = vector.shape_cast %127 : vector<1x4x1xf32> to vector<4x1xf32>
    %129 = vector.shape_cast %126 : vector<4x1xf32> to vector<1x4x1xf32>
    tpu.vector_store %arg7[%c6_54, %c0_55, %c0_56], %129 {strides = array<i32>} : memref<8x4x1xf32, #tpu.memory_space<vmem>>, vector<1x4x1xf32>,
    %c7 = arith.constant 7 : index
    %c0_57 = arith.constant 0 : index
    %c0_58 = arith.constant 0 : index
    %130 = vector.load %arg7[%c7, %c0_57, %c0_58] : memref<8x4x1xf32, #tpu.memory_space<vmem>>, vector<1x4x1xf32>
    %131 = vector.shape_cast %130 : vector<1x4x1xf32> to vector<4x1xf32>
    %cst_59 = arith.constant dense<0.000000e+00> : vector<1xf32>
    %132 = vector.multi_reduction <add>, %14, %cst_59 [1] : vector<1x128xf32> to vector<1xf32>
    %133 = vector.shape_cast %132 : vector<1xf32> to vector<1x1xf32>
    %134 = vector.broadcast %133 : vector<1x1xf32> to vector<4x1xf32>
    %135 = arith.addf %131, %134 : vector<4x1xf32>
    %c7_60 = arith.constant 7 : index
    %c0_61 = arith.constant 0 : index
    %c0_62 = arith.constant 0 : index
    %136 = vector.load %arg7[%c7_60, %c0_61, %c0_62] : memref<8x4x1xf32, #tpu.memory_space<vmem>>, vector<1x4x1xf32>
    %137 = vector.shape_cast %136 : vector<1x4x1xf32> to vector<4x1xf32>
    %138 = vector.shape_cast %135 : vector<4x1xf32> to vector<1x4x1xf32>
    tpu.vector_store %arg7[%c7_60, %c0_61, %c0_62], %138 {strides = array<i32>} : memref<8x4x1xf32, #tpu.memory_space<vmem>>, vector<1x4x1xf32>,
    %cst_63 = arith.constant 1.000000e+00 : f32
    %139 = vector.broadcast %cst_63 : f32 to vector<1x128xf32>
    %140 = arith.select %12, %36, %139 : vector<1x128xi1>, vector<1x128xf32>
    %c0_64 = arith.constant 0 : index
    %c0_65 = arith.constant 0 : index
    %c0_66 = arith.constant 0 : index
    %141 = vector.load %arg5[%c0_64, %c0_65, %c0_66] : memref<1x1x128xf32, #tpu.memory_space<vmem>>, vector<1x1x128xf32>
    %142 = vector.shape_cast %141 : vector<1x1x128xf32> to vector<1x128xf32>
    %143 = vector.shape_cast %140 : vector<1x128xf32> to vector<1x1x128xf32>
    tpu.vector_store %arg5[%c0_64, %c0_65, %c0_66], %143 {strides = array<i32>} : memref<1x1x128xf32, #tpu.memory_space<vmem>>, vector<1x1x128xf32>,
    %c0_i32_67 = arith.constant 0 : i32
    %144 = arith.cmpi eq, %arg2, %c0_i32_67 : i32
    %145 = arith.extui %144 : i1 to i32
    %c0_i32_68 = arith.constant 0 : i32
    %146 = arith.cmpi ne, %145, %c0_i32_68 : i32
    scf.if %146 {
      %c0_69 = arith.constant 0 : index
      %c0_70 = arith.constant 0 : index
      %c0_71 = arith.constant 0 : index
      %147 = vector.load %arg7[%c0_69, %c0_70, %c0_71] : memref<8x4x1xf32, #tpu.memory_space<vmem>>, vector<1x4x1xf32>
      %148 = vector.shape_cast %147 : vector<1x4x1xf32> to vector<4x1xf32>
      %c1_72 = arith.constant 1 : index
      %c0_73 = arith.constant 0 : index
      %c0_74 = arith.constant 0 : index
      %149 = vector.load %arg7[%c1_72, %c0_73, %c0_74] : memref<8x4x1xf32, #tpu.memory_space<vmem>>, vector<1x4x1xf32>
      %150 = vector.shape_cast %149 : vector<1x4x1xf32> to vector<4x1xf32>
      %c2_75 = arith.constant 2 : index
      %c0_76 = arith.constant 0 : index
      %c0_77 = arith.constant 0 : index
      %151 = vector.load %arg7[%c2_75, %c0_76, %c0_77] : memref<8x4x1xf32, #tpu.memory_space<vmem>>, vector<1x4x1xf32>
      %152 = vector.shape_cast %151 : vector<1x4x1xf32> to vector<4x1xf32>
      %c3_78 = arith.constant 3 : index
      %c0_79 = arith.constant 0 : index
      %c0_80 = arith.constant 0 : index
      %153 = vector.load %arg7[%c3_78, %c0_79, %c0_80] : memref<8x4x1xf32, #tpu.memory_space<vmem>>, vector<1x4x1xf32>
      %154 = vector.shape_cast %153 : vector<1x4x1xf32> to vector<4x1xf32>
      %c4_81 = arith.constant 4 : index
      %c0_82 = arith.constant 0 : index
      %c0_83 = arith.constant 0 : index
      %155 = vector.load %arg7[%c4_81, %c0_82, %c0_83] : memref<8x4x1xf32, #tpu.memory_space<vmem>>, vector<1x4x1xf32>
      %156 = vector.shape_cast %155 : vector<1x4x1xf32> to vector<4x1xf32>
      %c5_84 = arith.constant 5 : index
      %c0_85 = arith.constant 0 : index
      %c0_86 = arith.constant 0 : index
      %157 = vector.load %arg7[%c5_84, %c0_85, %c0_86] : memref<8x4x1xf32, #tpu.memory_space<vmem>>, vector<1x4x1xf32>
      %158 = vector.shape_cast %157 : vector<1x4x1xf32> to vector<4x1xf32>
      %c6_87 = arith.constant 6 : index
      %c0_88 = arith.constant 0 : index
      %c0_89 = arith.constant 0 : index
      %159 = vector.load %arg7[%c6_87, %c0_88, %c0_89] : memref<8x4x1xf32, #tpu.memory_space<vmem>>, vector<1x4x1xf32>
      %160 = vector.shape_cast %159 : vector<1x4x1xf32> to vector<4x1xf32>
      %c7_90 = arith.constant 7 : index
      %c0_91 = arith.constant 0 : index
      %c0_92 = arith.constant 0 : index
      %161 = vector.load %arg7[%c7_90, %c0_91, %c0_92] : memref<8x4x1xf32, #tpu.memory_space<vmem>>, vector<1x4x1xf32>
      %162 = vector.shape_cast %161 : vector<1x4x1xf32> to vector<4x1xf32>
      %cst_93 = arith.constant 0.000000e+00 : f32
      %163 = vector.broadcast %cst_93 : f32 to vector<4x120xf32>
      %164 = tpu.concatenate %148, %150, %152, %154, %156, %158, %160, %162, %163 in 1 : vector<4x1xf32>, vector<4x1xf32>, vector<4x1xf32>, vector<4x1xf32>, vector<4x1xf32>, vector<4x1xf32>, vector<4x1xf32>, vector<4x1xf32>, vector<4x120xf32> -> vector<4x128xf32>
      %165 = vector.shape_cast %164 : vector<4x128xf32> to vector<1x1x4x128xf32>
      %c0_94 = arith.constant 0 : index
      %c0_95 = arith.constant 0 : index
      %c0_96 = arith.constant 0 : index
      %c0_97 = arith.constant 0 : index
      %166 = vector.load %arg6[%c0_94, %c0_95, %c0_96, %c0_97] : memref<1x1x4x128xf32, #tpu.memory_space<vmem>>, vector<1x1x4x128xf32>
      tpu.vector_store %arg6[%c0_94, %c0_95, %c0_96, %c0_97], %165 {strides = array<i32>} : memref<1x1x4x128xf32, #tpu.memory_space<vmem>>, vector<1x1x4x128xf32>,
    } else {
    }
    return
  }
  func.func @transform_0(%arg0: i32, %arg1: i32, %arg2: i32) -> (i32, i32, i32) {
    %c1_i32 = arith.constant 1 : i32
    %0 = arith.muli %arg1, %c1_i32 : i32
    %1 = arith.addi %0, %arg2 : i32
    %c0_i32 = arith.constant 0 : i32
    %c0_i32_0 = arith.constant 0 : i32
    return %arg0, %c0_i32, %1 : i32, i32, i32
  }
  func.func @transform_1(%arg0: i32, %arg1: i32, %arg2: i32) -> (i32, i32, i32) {
    %c1_i32 = arith.constant 1 : i32
    %0 = arith.muli %arg1, %c1_i32 : i32
    %1 = arith.addi %0, %arg2 : i32
    %c0_i32 = arith.constant 0 : i32
    %c0_i32_0 = arith.constant 0 : i32
    return %arg0, %c0_i32, %1 : i32, i32, i32
  }
  func.func @transform_2(%arg0: i32, %arg1: i32, %arg2: i32) -> (i32, i32, i32) {
    %c1_i32 = arith.constant 1 : i32
    %0 = arith.muli %arg1, %c1_i32 : i32
    %1 = arith.addi %0, %arg2 : i32
    %c0_i32 = arith.constant 0 : i32
    %c0_i32_0 = arith.constant 0 : i32
    return %arg0, %c0_i32, %1 : i32, i32, i32
  }
  func.func @transform_3(%arg0: i32, %arg1: i32, %arg2: i32) -> (i32, i32, i32, i32) {
    %c0_i32 = arith.constant 0 : i32
    %c0_i32_0 = arith.constant 0 : i32
    %c0_i32_1 = arith.constant 0 : i32
    return %arg0, %arg1, %c0_i32, %c0_i32_0 : i32, i32, i32, i32
  }
}

module attributes {stable_mosaic.version = 11 : i64} {
  func.func @_ohem_kernel(%arg0: i32, %arg1: i32, %arg2: i32, %arg3: memref<1x1xf32, #tpu.memory_space<smem>>, %arg4: memref<1x1x128xf32, #tpu.memory_space<vmem>>, %arg5: memref<1x1x1x2xf32, #tpu.memory_space<vmem>>) attributes {dimension_semantics = [#tpu.dimension_semantics<parallel>, #tpu.dimension_semantics<parallel>, #tpu.dimension_semantics<arbitrary>], iteration_bounds = array<i64: 2, 2, 1>, scalar_prefetch = 0 : i64, scratch_operands = 0 : i64, tpu.core_type = #tpu.core_type<tc>, window_params = [{transform_indices = @transform_0, window_bounds = array<i64: 1, 1>}, {transform_indices = @transform_1, window_bounds = array<i64: 1, 1, 128>}, {transform_indices = @transform_2, window_bounds = array<i64: 1, 1, 1, 2>}]} {
    %c0_i32 = arith.constant 0 : i32
    %0 = arith.cmpi eq, %arg2, %c0_i32 : i32
    %1 = arith.extui %0 : i1 to i32
    %c0_i32_0 = arith.constant 0 : i32
    %2 = arith.cmpi ne, %1, %c0_i32_0 : i32
    scf.if %2 {
      %cst_16 = arith.constant 0.000000e+00 : f32
      %23 = vector.broadcast %cst_16 : f32 to vector<1x1x1x2xf32>
      %c0_17 = arith.constant 0 : index
      %c0_18 = arith.constant 0 : index
      %c0_19 = arith.constant 0 : index
      %c0_20 = arith.constant 0 : index
      %24 = vector.load %arg5[%c0_17, %c0_18, %c0_19, %c0_20] : memref<1x1x1x2xf32, #tpu.memory_space<vmem>>, vector<1x1x1x2xf32>
      tpu.vector_store %arg5[%c0_17, %c0_18, %c0_19, %c0_20], %23 {strides = array<i32>} : memref<1x1x1x2xf32, #tpu.memory_space<vmem>>, vector<1x1x1x2xf32>,
    } else {
    }
    %c0 = arith.constant 0 : index
    %c0_1 = arith.constant 0 : index
    %3 = memref.load %arg3[%c0, %c0_1] : memref<1x1xf32, #tpu.memory_space<smem>>
    %c0_2 = arith.constant 0 : index
    %c0_3 = arith.constant 0 : index
    %c0_4 = arith.constant 0 : index
    %4 = vector.load %arg4[%c0_2, %c0_3, %c0_4] : memref<1x1x128xf32, #tpu.memory_space<vmem>>, vector<1x1x128xf32>
    %5 = vector.shape_cast %4 : vector<1x1x128xf32> to vector<1x128xf32>
    %6 = vector.broadcast %3 : f32 to vector<1x128xf32>
    %7 = arith.cmpf olt, %5, %6 : vector<1x128xf32>
    %cst = arith.constant 0.000000e+00 : f32
    %8 = vector.broadcast %cst : f32 to vector<1x128xf32>
    %9 = arith.subf %8, %5 : vector<1x128xf32>
    %cst_5 = arith.constant 0.000000e+00 : f32
    %10 = vector.broadcast %cst_5 : f32 to vector<1x128xf32>
    %11 = arith.select %7, %9, %10 : vector<1x128xi1>, vector<1x128xf32>
    %cst_6 = arith.constant dense<0.000000e+00> : vector<1xf32>
    %12 = vector.multi_reduction <add>, %11, %cst_6 [1] : vector<1x128xf32> to vector<1xf32>
    %13 = vector.shape_cast %12 : vector<1xf32> to vector<1x1xf32>
    %14 = arith.extui %7 : vector<1x128xi1> to vector<1x128xi32>
    %15 = arith.sitofp %14 : vector<1x128xi32> to vector<1x128xf32>
    %cst_7 = arith.constant dense<0.000000e+00> : vector<1xf32>
    %16 = vector.multi_reduction <add>, %15, %cst_7 [1] : vector<1x128xf32> to vector<1xf32>
    %17 = vector.shape_cast %16 : vector<1xf32> to vector<1x1xf32>
    %c0_8 = arith.constant 0 : index
    %c0_9 = arith.constant 0 : index
    %c0_10 = arith.constant 0 : index
    %c0_11 = arith.constant 0 : index
    %18 = vector.load %arg5[%c0_8, %c0_9, %c0_10, %c0_11] : memref<1x1x1x2xf32, #tpu.memory_space<vmem>>, vector<1x1x1x2xf32>
    %19 = tpu.concatenate %13, %17 in 1 : vector<1x1xf32>, vector<1x1xf32> -> vector<1x2xf32>
    %20 = vector.shape_cast %19 : vector<1x2xf32> to vector<1x1x1x2xf32>
    %21 = arith.addf %18, %20 : vector<1x1x1x2xf32>
    %c0_12 = arith.constant 0 : index
    %c0_13 = arith.constant 0 : index
    %c0_14 = arith.constant 0 : index
    %c0_15 = arith.constant 0 : index
    %22 = vector.load %arg5[%c0_12, %c0_13, %c0_14, %c0_15] : memref<1x1x1x2xf32, #tpu.memory_space<vmem>>, vector<1x1x1x2xf32>
    tpu.vector_store %arg5[%c0_12, %c0_13, %c0_14, %c0_15], %21 {strides = array<i32>} : memref<1x1x1x2xf32, #tpu.memory_space<vmem>>, vector<1x1x1x2xf32>,
    return
  }
  func.func @transform_0(%arg0: i32, %arg1: i32, %arg2: i32) -> (i32, i32) {
    %c0_i32 = arith.constant 0 : i32
    %c0_i32_0 = arith.constant 0 : i32
    %c0_i32_1 = arith.constant 0 : i32
    return %c0_i32, %c0_i32_0 : i32, i32
  }
  func.func @transform_1(%arg0: i32, %arg1: i32, %arg2: i32) -> (i32, i32, i32) {
    %c1_i32 = arith.constant 1 : i32
    %0 = arith.muli %arg1, %c1_i32 : i32
    %1 = arith.addi %0, %arg2 : i32
    %c0_i32 = arith.constant 0 : i32
    %c0_i32_0 = arith.constant 0 : i32
    return %arg0, %c0_i32, %1 : i32, i32, i32
  }
  func.func @transform_2(%arg0: i32, %arg1: i32, %arg2: i32) -> (i32, i32, i32, i32) {
    %c0_i32 = arith.constant 0 : i32
    %c0_i32_0 = arith.constant 0 : i32
    %c0_i32_1 = arith.constant 0 : i32
    return %arg0, %arg1, %c0_i32, %c0_i32_0 : i32, i32, i32, i32
  }
}

</mosaic_0001>

<llo_original>
// kernel: blob_loss.3
$region0: #{blob_loss.3}
  #allocation0 [shape = 'u32[]', space=smem, size = 0x4, offset = 0x4, fixed_abs, tag = 'smem constant byte address 0x4 - core index']
  #allocation1 [shape = 'u32[72,128]{1,0:T(1,128)}', space=vmem, size = 0x9000, scoped, tag = 'internal scratch']
  #allocation2 [shape = 'f32[1,1]{1,0:T(1,128)S(6)}', space=smem, size = 0x200, scoped, tag = 'scoped memory for blob_loss.3']
  %s0 = inlined_call_operand.<no memory space> [shape: f32[1,1], index: 0, kind: input, shape index: {}]
  %s1 = inlined_call_operand.vmem [shape: f32[2,1,256], index: 1, kind: input, shape index: {}]
  %s2 = inlined_call_operand.vmem [shape: f32[2,2,1,2], index: 2, kind: output, shape index: {}]
  %s3 = sld [smem:[#allocation0]]
  $region45: #{blob_loss.3} parent=0
    _
  %s5 = ssub.s32 1, %s3
  %s6 = scalar_select 0, %s5, %s3
  %7 = sst [smem:[#allocation2]] %s0
  loop: start=0, step=1, limit=6
  $region2: #{blob_loss.3} parent=0 // loop_pre_header
    _
  $region3: #{blob_loss.3} parent=0 // loop_header
    %s9 = sphi 0, %s13
    %p10 = scmp.ge.s32.totalorder %s9, 6
    %s16 = sphi 0, %s35
    %s17 = sphi 0, %s31
    %s18 = sphi 0, %s27
    %s19 = sphi 0, %s16
    %s20 = sphi 0, %s17
    %s21 = sphi 0, %s18
    %s22 = sphi 0, %s19
    %s23 = sphi 0, %s20
    %s24 = sphi 0, %s21
    %s36 = sphi 0, %s36
    %s38 = sphi 0, %s36
    %s39 = sphi 0, %s38
    %s53 = sphi 0, %s39
    %s63 = sphi 0, %s65
    %s66 = sphi 0, %s63
    %s67 = sphi 0, %s66
    %s83 = sphi 0, %s67
    %s91 = sphi 0, %s93
    %s94 = sphi 0, %s91
    %s95 = sphi 0, %s94
    %s111 = sphi 0, %s95
  $region4: #{blob_loss.3} parent=0 // loop_header_branch
    %12 = sbr.rel (%p10) target = $region8
  $region5: #{blob_loss.3} parent=0 // loop_body
    %s14 = ssub.s32 %s9, 1
    %s15 = ssub.s32 %s9, 2
    %s25 = sadd.s32 1, %s18
    %p26 = scmp.ge.s32.totalorder %s25, 1
    %s27 = scalar_select %p26, 0, %s25
    %s28 = sadd.s32 1, %s17
    %s29 = scalar_select %p26, %s28, %s17
    %p30 = scmp.ge.s32.totalorder %s29, 2
    %s31 = scalar_select %p30, 0, %s29
    %s32 = sadd.s32 1, %s16
    %s33 = scalar_select %p30, %s32, %s16
    %p34 = scmp.ge.s32.totalorder %s33, 2
    %s35 = scalar_select %p34, 0, %s33
    %s37 = sadd.s32 %s36, 1
    %p40 = scmp.eq.s32.totalorder %s9, 3
    %p41 = scmp.ne.s32.totalorder %s36, %s38
    %p42 = scmp.eq.s32.totalorder %s9, 0
    %p43 = por %p41, %p42
    %p44 = scmp.ne.s32.totalorder %s36, %s38
    %p45 = scmp.eq.s32.totalorder %s14, 3
    %p46 = por %p44, %p45
    %p47 = scmp.ne.s32.totalorder %s38, %s39
    %p48 = scmp.eq.s32.totalorder %s14, 0
    %p49 = por %p47, %p48
    %p50 = scmp.ne.s32.totalorder %s38, %s39
    %p51 = scmp.eq.s32.totalorder %s15, 3
    %p52 = por %p50, %p51
    %p54 = scmp.ne.s32.totalorder %s39, %s53
    %p55 = scmp.eq.s32.totalorder %s15, 0
    %p56 = por %p54, %p55
    %s57 = sadd.s32 %s17, %s18
    %s58 = sadd.s32 %s31, %s27
    %s59 = ssub.s32 %s16, %s35
    %s60 = ssub.s32 %s57, %s58
    %s61 = sor.u32 %s59, %s60
    %p62 = scmp.eq.s32.totalorder %s61, 0
    %s64 = sadd.s32 %s63, 1
    %s65 = scalar_select %p62, %s63, %s64
    %p68 = pneg %p62
    %p69 = scmp.eq.s32.totalorder %s9, 3
    %p70 = por %p68, %p69
    %p71 = scmp.ne.s32.totalorder %s63, %s66
    %p72 = scmp.eq.s32.totalorder %s9, 0
    %p73 = por %p71, %p72
    %p74 = scmp.ne.s32.totalorder %s63, %s66
    %p75 = scmp.eq.s32.totalorder %s14, 3
    %p76 = por %p74, %p75
    %p77 = scmp.ne.s32.totalorder %s66, %s67
    %p78 = scmp.eq.s32.totalorder %s14, 0
    %p79 = por %p77, %p78
    %p80 = scmp.ne.s32.totalorder %s66, %s67
    %p81 = scmp.eq.s32.totalorder %s15, 3
    %p82 = por %p80, %p81
    %p84 = scmp.ne.s32.totalorder %s67, %s83
    %p85 = scmp.eq.s32.totalorder %s15, 0
    %p86 = por %p84, %p85
    %s87 = ssub.s32 %s16, %s35
    %s88 = ssub.s32 %s17, %s31
    %s89 = sor.u32 %s87, %s88
    %p90 = scmp.eq.s32.totalorder %s89, 0
    %s92 = sadd.s32 %s91, 1
    %s93 = scalar_select %p90, %s91, %s92
    %p96 = pneg %p90
    %p97 = scmp.eq.s32.totalorder %s9, 3
    %p98 = por %p96, %p97
    %p99 = scmp.ne.s32.totalorder %s91, %s94
    %p100 = scmp.eq.s32.totalorder %s9, 0
    %p101 = por %p99, %p100
    %p102 = scmp.ne.s32.totalorder %s91, %s94
    %p103 = scmp.eq.s32.totalorder %s14, 3
    %p104 = por %p102, %p103
    %p105 = scmp.ne.s32.totalorder %s94, %s95
    %p106 = scmp.eq.s32.totalorder %s14, 0
    %p107 = por %p105, %p106
    %p108 = scmp.ne.s32.totalorder %s94, %s95
    %p109 = scmp.eq.s32.totalorder %s15, 3
    %p110 = por %p108, %p109
    %p112 = scmp.ne.s32.totalorder %s95, %s111
    %p113 = scmp.eq.s32.totalorder %s15, 0
    %p114 = por %p112, %p113
    %p115 = scmp.le.s32.totalorder 1, %s9
    %p116 = scmp.lt.s32.totalorder %s9, 5
    %p117 = pnand %p115, %p116
    %p118 = pneg %p117
    // Predicated region
    $region9: #{blob_loss.3} parent=5 // pred_check
      _
    $region10: #{blob_loss.3} parent=5 // pred_check_branch
      %120 = sbr.rel (%p117) target = $region12
    $region11: #{blob_loss.3} parent=5 // pred_region
      %s121 = ssub.s32 %s9, 1
      // Predicated region
      $region13: #{blob_loss.3} parent=11 // pred_check
        %p122 = pneg %p49
      $region14: #{blob_loss.3} parent=11 // pred_check_branch
        %124 = sbr.rel (%p122) target = $region16
      $region15: #{blob_loss.3} parent=11 // pred_region
        _
      $region16: #{blob_loss.3} parent=11 // pred_fallthru
        _
    $region12: #{blob_loss.3} parent=5 // pred_fallthru
      _
    %p125 = scmp.lt.s32.totalorder %s9, 4
    // Predicated region
    $region17: #{blob_loss.3} parent=5 // pred_check
      %p126 = pneg %p125
    $region18: #{blob_loss.3} parent=5 // pred_check_branch
      %128 = sbr.rel (%p126) target = $region20
    $region19: #{blob_loss.3} parent=5 // pred_region
      // Predicated region
      $region21: #{blob_loss.3} parent=19 // pred_check
        %p129 = pneg %p73
      $region22: #{blob_loss.3} parent=19 // pred_check_branch
        %131 = sbr.rel (%p129) target = $region24
      $region23: #{blob_loss.3} parent=19 // pred_region
        %s132 = sadd.s32 %s17, %s18
        %p133 = scmp.lt.s32.totalorder %s16, 1
        %s134 = scalar_select %p133, %s16, 1
        %p135 = scmp.lt.s32.totalorder %s132, 1
        %s136 = scalar_select %p135, %s132, 1
        %s137 = smul.addr %s134, 2
        %s138 = sadd.s32 %s136, %s137
        %s139 = scalar_lea.vmem %s1, %s138
        %s140 = sadd.s32 %s17, %s18
      $region24: #{blob_loss.3} parent=19 // pred_fallthru
        _
    $region20: #{blob_loss.3} parent=5 // pred_fallthru
      _
    %p141 = scmp.le.s32.totalorder 1, %s9
    %p142 = scmp.lt.s32.totalorder %s9, 5
    %p143 = pnand %p141, %p142
    %p144 = pneg %p143
    // Predicated region
    $region25: #{blob_loss.3} parent=5 // pred_check
      _
    $region26: #{blob_loss.3} parent=5 // pred_check_branch
      %146 = sbr.rel (%p143) target = $region28
    $region27: #{blob_loss.3} parent=5 // pred_region
      %s147 = ssub.s32 %s9, 1
      %p148 = pneg %p49
      %p149 = pneg %p46
      %s150 = sadd.s32 %s20, %s21
      %p151 = scmp.lt.s32.totalorder %s19, 1
      %s152 = scalar_select %p151, %s19, 1
      %p153 = scmp.lt.s32.totalorder %s150, 1
      %s154 = scalar_select %p153, %s150, 1
      %s155 = smul.addr %s152, 2
      %s156 = sadd.s32 %s154, %s155
      %s157 = scalar_lea.vmem %s1, %s156
      %p158 = pneg %p79
      %p159 = pneg %p76
      %p160 = pneg %p107
      %p161 = pneg %p104
      %p162 = scmp.lt.s32.totalorder %s19, 1
      %s163 = scalar_select %p162, %s19, 1
      %p164 = scmp.lt.s32.totalorder %s20, 1
      %s165 = scalar_select %p164, %s20, 1
      %s166 = smul.addr %s163, 2
      %s167 = sadd.s32 %s165, %s166
      %s168 = scalar_lea.vmem %s2, %s167
      %s169 = sadd.s32 %s20, %s21
      %p170 = scmp.lt.s32.totalorder %s19, 1
      %s171 = scalar_select %p170, %s19, 1
      %p172 = scmp.lt.s32.totalorder %s169, 1
      %s173 = scalar_select %p172, %s169, 1
      %s174 = smul.addr %s171, 2
      %s175 = sadd.s32 %s173, %s174
      %s176 = scalar_lea.vmem %s1, %s175
      %s177 = sadd.s32 %s20, %s21
      %p178 = scmp.lt.s32.totalorder %s19, 1
      %s179 = scalar_select %p178, %s19, 1
      %p180 = scmp.lt.s32.totalorder %s20, 1
      %s181 = scalar_select %p180, %s20, 1
      %s182 = smul.addr %s179, 2
      %s183 = sadd.s32 %s181, %s182
      %s184 = scalar_lea.vmem %s2, %s183
      %p185 = scmp.eq.s32.totalorder %s21, 0
      // Predicated region
      $region29: #{blob_loss.3} parent=27 // pred_check
        %p186 = pneg %p185
      $region30: #{blob_loss.3} parent=27 // pred_check_branch
        %188 = sbr.rel (%p186) target = $region32
      $region31: #{blob_loss.3} parent=27 // pred_region
        %vm189 = vcmask 8192
        %190 = vst.msk [vmem:[%s184] sm:$0x1] %vm189, 0.0
      $region32: #{blob_loss.3} parent=27 // pred_fallthru
        _
      %s191 = sld [smem:[#allocation2]]
      %v192 = vld [vmem:[%s176] sm:$0x1]
      %v193 = vstv %s191
      %vm194 = vcmp.lt.f32.partialorder %v192, %v193
      %v195 = vsub.f32 0.0, %v192
      %v196 = vsel %vm194, %v195, 0.0
      %vm197 = vcmask 1040384
      %v198 = vsel %vm197, %v196, 0.0
      %199 = vadd.xlane.f32.xlu0 %v198
      %v200 = vpop.xlane.xlu0 %199
      %v201 = vsel %vm194, 1, 0
      %v202 = vcvt.s32.f32 %v201
      %v203 = vsel %vm197, %v202, 0.0
      %204 = vadd.xlane.f32.xlu0 %v203
      %v205 = vpop.xlane.xlu0 %204
      %v206 = vld [vmem:[%s184] sm:$0x1]
      %vm207 = vcmask 7168
      %v208 = vsel %vm207, %v200, %v205
      %v209 = vadd.f32 %v206, %v208
      %vm210 = vcmask 8192
      %211 = vst.msk [vmem:[%s184] sm:$0x1] %vm210, %v209
      %p212 = scmp.lt.s32.totalorder %s19, 1
      %s213 = scalar_select %p212, %s19, 1
      %p214 = scmp.lt.s32.totalorder %s20, 1
      %s215 = scalar_select %p214, %s20, 1
      %s216 = smul.addr %s213, 2
      %s217 = sadd.s32 %s215, %s216
      %s218 = scalar_lea.vmem %s2, %s217
      // Predicated region
      $region33: #{blob_loss.3} parent=27 // pred_check
        %p219 = pneg %p104
      $region34: #{blob_loss.3} parent=27 // pred_check_branch
        %221 = sbr.rel (%p219) target = $region36
      $region35: #{blob_loss.3} parent=27 // pred_region
        _
      $region36: #{blob_loss.3} parent=27 // pred_fallthru
        _
    $region28: #{blob_loss.3} parent=5 // pred_fallthru
      _
    %p222 = scmp.le.s32.totalorder 2, %s9
    // Predicated region
    $region37: #{blob_loss.3} parent=5 // pred_check
      %p223 = pneg %p222
    $region38: #{blob_loss.3} parent=5 // pred_check_branch
      %225 = sbr.rel (%p223) target = $region40
    $region39: #{blob_loss.3} parent=5 // pred_region
      %s226 = ssub.s32 %s9, 2
      // Predicated region
      $region41: #{blob_loss.3} parent=39 // pred_check
        %p227 = pneg %p110
      $region42: #{blob_loss.3} parent=39 // pred_check_branch
        %229 = sbr.rel (%p227) target = $region44
      $region43: #{blob_loss.3} parent=39 // pred_region
        %p230 = scmp.lt.s32.totalorder %s22, 1
        %s231 = scalar_select %p230, %s22, 1
        %p232 = scmp.lt.s32.totalorder %s23, 1
        %s233 = scalar_select %p232, %s23, 1
        %s234 = smul.addr %s231, 2
        %s235 = sadd.s32 %s233, %s234
        %s236 = scalar_lea.vmem %s2, %s235
      $region44: #{blob_loss.3} parent=39 // pred_fallthru
        _
    $region40: #{blob_loss.3} parent=5 // pred_fallthru
      _
  $region6: #{blob_loss.3} parent=0 // loop_footer
    %s13 = sadd.s32 1, %s9
  $region7: #{blob_loss.3} parent=0 // loop_footer_branch
    %8 = sbr.rel target = $region3
  $region8: #{blob_loss.3} parent=0 // loop_exit
    _

// kernel: blob_loss.2
$region0: #{blob_loss.2}
  #allocation0 [shape = 'u32[]', space=smem, size = 0x4, offset = 0x4, fixed_abs, tag = 'smem constant byte address 0x4 - core index']
  #allocation1 [shape = 'u32[72,128]{1,0:T(1,128)}', space=vmem, size = 0x9000, scoped, tag = 'internal scratch']
  #allocation2 [shape = 'f32[8,4,1]{2,1,0:T(4,128)}', space=vmem, size = 0x4000, scoped, tag = 'scratch operand']
  %s0 = inlined_call_operand.vmem [shape: bf16[2,4,256], index: 0, kind: input, shape index: {}]
  %s1 = inlined_call_operand.vmem [shape: s32[2,1,256], index: 1, kind: input, shape index: {}]
  %s2 = inlined_call_operand.vmem [shape: f32[2,1,256], index: 2, kind: output, shape index: {0}]
  %s3 = inlined_call_operand.vmem [shape: f32[2,2,4,128], index: 3, kind: output, shape index: {1}]
  %4 = xla_tuple %s2, %s3
  %s5 = sld [smem:[#allocation0]]
  $region57: #{blob_loss.2} parent=0
    _
  %s7 = ssub.s32 1, %s5
  %s8 = scalar_select 0, %s7, %s5
  loop: start=0, step=1, limit=6
  $region2: #{blob_loss.2} parent=0 // loop_pre_header
    _
  $region3: #{blob_loss.2} parent=0 // loop_header
    %s10 = sphi 0, %s14
    %p11 = scmp.ge.s32.totalorder %s10, 6
    %s17 = sphi 0, %s36
    %s18 = sphi 0, %s32
    %s19 = sphi 0, %s28
    %s20 = sphi 0, %s17
    %s21 = sphi 0, %s18
    %s22 = sphi 0, %s19
    %s23 = sphi 0, %s20
    %s24 = sphi 0, %s21
    %s25 = sphi 0, %s22
    %s43 = sphi 0, %s45
    %s46 = sphi 0, %s43
    %s47 = sphi 0, %s46
    %s63 = sphi 0, %s47
    %s73 = sphi 0, %s75
    %s76 = sphi 0, %s73
    %s77 = sphi 0, %s76
    %s93 = sphi 0, %s77
    %s103 = sphi 0, %s105
    %s106 = sphi 0, %s103
    %s107 = sphi 0, %s106
    %s123 = sphi 0, %s107
    %s131 = sphi 0, %s133
    %s134 = sphi 0, %s131
    %s135 = sphi 0, %s134
    %s151 = sphi 0, %s135
  $region4: #{blob_loss.2} parent=0 // loop_header_branch
    %13 = sbr.rel (%p11) target = $region8
  $region5: #{blob_loss.2} parent=0 // loop_body
    %s15 = ssub.s32 %s10, 1
    %s16 = ssub.s32 %s10, 2
    %s26 = sadd.s32 1, %s19
    %p27 = scmp.ge.s32.totalorder %s26, 1
    %s28 = scalar_select %p27, 0, %s26
    %s29 = sadd.s32 1, %s18
    %s30 = scalar_select %p27, %s29, %s18
    %p31 = scmp.ge.s32.totalorder %s30, 2
    %s32 = scalar_select %p31, 0, %s30
    %s33 = sadd.s32 1, %s17
    %s34 = scalar_select %p31, %s33, %s17
    %p35 = scmp.ge.s32.totalorder %s34, 2
    %s36 = scalar_select %p35, 0, %s34
    %s37 = sadd.s32 %s18, %s19
    %s38 = sadd.s32 %s32, %s28
    %s39 = ssub.s32 %s17, %s36
    %s40 = ssub.s32 %s37, %s38
    %s41 = sor.u32 %s39, %s40
    %p42 = scmp.eq.s32.totalorder %s41, 0
    %s44 = sadd.s32 %s43, 1
    %s45 = scalar_select %p42, %s43, %s44
    %p48 = pneg %p42
    %p49 = scmp.eq.s32.totalorder %s10, 3
    %p50 = por %p48, %p49
    %p51 = scmp.ne.s32.totalorder %s43, %s46
    %p52 = scmp.eq.s32.totalorder %s10, 0
    %p53 = por %p51, %p52
    %p54 = scmp.ne.s32.totalorder %s43, %s46
    %p55 = scmp.eq.s32.totalorder %s15, 3
    %p56 = por %p54, %p55
    %p57 = scmp.ne.s32.totalorder %s46, %s47
    %p58 = scmp.eq.s32.totalorder %s15, 0
    %p59 = por %p57, %p58
    %p60 = scmp.ne.s32.totalorder %s46, %s47
    %p61 = scmp.eq.s32.totalorder %s16, 3
    %p62 = por %p60, %p61
    %p64 = scmp.ne.s32.totalorder %s47, %s63
    %p65 = scmp.eq.s32.totalorder %s16, 0
    %p66 = por %p64, %p65
    %s67 = sadd.s32 %s18, %s19
    %s68 = sadd.s32 %s32, %s28
    %s69 = ssub.s32 %s17, %s36
    %s70 = ssub.s32 %s67, %s68
    %s71 = sor.u32 %s69, %s70
    %p72 = scmp.eq.s32.totalorder %s71, 0
    %s74 = sadd.s32 %s73, 1
    %s75 = scalar_select %p72, %s73, %s74
    %p78 = pneg %p72
    %p79 = scmp.eq.s32.totalorder %s10, 3
    %p80 = por %p78, %p79
    %p81 = scmp.ne.s32.totalorder %s73, %s76
    %p82 = scmp.eq.s32.totalorder %s10, 0
    %p83 = por %p81, %p82
    %p84 = scmp.ne.s32.totalorder %s73, %s76
    %p85 = scmp.eq.s32.totalorder %s15, 3
    %p86 = por %p84, %p85
    %p87 = scmp.ne.s32.totalorder %s76, %s77
    %p88 = scmp.eq.s32.totalorder %s15, 0
    %p89 = por %p87, %p88
    %p90 = scmp.ne.s32.totalorder %s76, %s77
    %p91 = scmp.eq.s32.totalorder %s16, 3
    %p92 = por %p90, %p91
    %p94 = scmp.ne.s32.totalorder %s77, %s93
    %p95 = scmp.eq.s32.totalorder %s16, 0
    %p96 = por %p94, %p95
    %s97 = sadd.s32 %s18, %s19
    %s98 = sadd.s32 %s32, %s28
    %s99 = ssub.s32 %s17, %s36
    %s100 = ssub.s32 %s97, %s98
    %s101 = sor.u32 %s99, %s100
    %p102 = scmp.eq.s32.totalorder %s101, 0
    %s104 = sadd.s32 %s103, 1
    %s105 = scalar_select %p102, %s103, %s104
    %p108 = pneg %p102
    %p109 = scmp.eq.s32.totalorder %s10, 3
    %p110 = por %p108, %p109
    %p111 = scmp.ne.s32.totalorder %s103, %s106
    %p112 = scmp.eq.s32.totalorder %s10, 0
    %p113 = por %p111, %p112
    %p114 = scmp.ne.s32.totalorder %s103, %s106
    %p115 = scmp.eq.s32.totalorder %s15, 3
    %p116 = por %p114, %p115
    %p117 = scmp.ne.s32.totalorder %s106, %s107
    %p118 = scmp.eq.s32.totalorder %s15, 0
    %p119 = por %p117, %p118
    %p120 = scmp.ne.s32.totalorder %s106, %s107
    %p121 = scmp.eq.s32.totalorder %s16, 3
    %p122 = por %p120, %p121
    %p124 = scmp.ne.s32.totalorder %s107, %s123
    %p125 = scmp.eq.s32.totalorder %s16, 0
    %p126 = por %p124, %p125
    %s127 = ssub.s32 %s17, %s36
    %s128 = ssub.s32 %s18, %s32
    %s129 = sor.u32 %s127, %s128
    %p130 = scmp.eq.s32.totalorder %s129, 0
    %s132 = sadd.s32 %s131, 1
    %s133 = scalar_select %p130, %s131, %s132
    %p136 = pneg %p130
    %p137 = scmp.eq.s32.totalorder %s10, 3
    %p138 = por %p136, %p137
    %p139 = scmp.ne.s32.totalorder %s131, %s134
    %p140 = scmp.eq.s32.totalorder %s10, 0
    %p141 = por %p139, %p140
    %p142 = scmp.ne.s32.totalorder %s131, %s134
    %p143 = scmp.eq.s32.totalorder %s15, 3
    %p144 = por %p142, %p143
    %p145 = scmp.ne.s32.totalorder %s134, %s135
    %p146 = scmp.eq.s32.totalorder %s15, 0
    %p147 = por %p145, %p146
    %p148 = scmp.ne.s32.totalorder %s134, %s135
    %p149 = scmp.eq.s32.totalorder %s16, 3
    %p150 = por %p148, %p149
    %p152 = scmp.ne.s32.totalorder %s135, %s151
    %p153 = scmp.eq.s32.totalorder %s16, 0
    %p154 = por %p152, %p153
    %p155 = scmp.le.s32.totalorder 1, %s10
    %p156 = scmp.lt.s32.totalorder %s10, 5
    %p157 = pnand %p155, %p156
    %p158 = pneg %p157
    // Predicated region
    $region9: #{blob_loss.2} parent=5 // pred_check
      _
    $region10: #{blob_loss.2} parent=5 // pred_check_branch
      %160 = sbr.rel (%p157) target = $region12
    $region11: #{blob_loss.2} parent=5 // pred_region
      %s161 = ssub.s32 %s10, 1
    $region12: #{blob_loss.2} parent=5 // pred_fallthru
      _
    %p162 = scmp.lt.s32.totalorder %s10, 4
    // Predicated region
    $region13: #{blob_loss.2} parent=5 // pred_check
      %p163 = pneg %p162
    $region14: #{blob_loss.2} parent=5 // pred_check_branch
      %165 = sbr.rel (%p163) target = $region16
    $region15: #{blob_loss.2} parent=5 // pred_region
      // Predicated region
      $region17: #{blob_loss.2} parent=15 // pred_check
        %p166 = pneg %p53
      $region18: #{blob_loss.2} parent=15 // pred_check_branch
        %168 = sbr.rel (%p166) target = $region20
      $region19: #{blob_loss.2} parent=15 // pred_region
        %s169 = sadd.s32 %s18, %s19
        %p170 = scmp.lt.s32.totalorder %s17, 1
        %s171 = scalar_select %p170, %s17, 1
        %p172 = scmp.lt.s32.totalorder %s169, 1
        %s173 = scalar_select %p172, %s169, 1
        %s174 = smul.addr %s171, 2
        %s175 = sadd.s32 %s173, %s174
        %s176 = smul.addr %s175, 2
        %s177 = scalar_lea.vmem %s0, %s176
        %s178 = sadd.s32 %s18, %s19
      $region20: #{blob_loss.2} parent=15 // pred_fallthru
        _
      // Predicated region
      $region21: #{blob_loss.2} parent=15 // pred_check
        %p179 = pneg %p83
      $region22: #{blob_loss.2} parent=15 // pred_check_branch
        %181 = sbr.rel (%p179) target = $region24
      $region23: #{blob_loss.2} parent=15 // pred_region
        %s182 = sadd.s32 %s18, %s19
        %p183 = scmp.lt.s32.totalorder %s17, 1
        %s184 = scalar_select %p183, %s17, 1
        %p185 = scmp.lt.s32.totalorder %s182, 1
        %s186 = scalar_select %p185, %s182, 1
        %s187 = smul.addr %s184, 2
        %s188 = sadd.s32 %s186, %s187
        %s189 = scalar_lea.vmem %s1, %s188
        %s190 = sadd.s32 %s18, %s19
      $region24: #{blob_loss.2} parent=15 // pred_fallthru
        _
    $region16: #{blob_loss.2} parent=5 // pred_fallthru
      _
    %p191 = scmp.le.s32.totalorder 1, %s10
    %p192 = scmp.lt.s32.totalorder %s10, 5
    %p193 = pnand %p191, %p192
    %p194 = pneg %p193
    // Predicated region
    $region25: #{blob_loss.2} parent=5 // pred_check
      _
    $region26: #{blob_loss.2} parent=5 // pred_check_branch
      %196 = sbr.rel (%p193) target = $region28
    $region27: #{blob_loss.2} parent=5 // pred_region
      %s197 = ssub.s32 %s10, 1
      %s198 = sadd.s32 %s21, %s22
      %p199 = scmp.lt.s32.totalorder %s20, 1
      %s200 = scalar_select %p199, %s20, 1
      %p201 = scmp.lt.s32.totalorder %s198, 1
      %s202 = scalar_select %p201, %s198, 1
      %s203 = smul.addr %s200, 2
      %s204 = sadd.s32 %s202, %s203
      %s205 = smul.addr %s204, 2
      %s206 = scalar_lea.vmem %s0, %s205
      %p207 = pneg %p59
      %p208 = pneg %p56
      %s209 = sadd.s32 %s21, %s22
      %p210 = scmp.lt.s32.totalorder %s20, 1
      %s211 = scalar_select %p210, %s20, 1
      %p212 = scmp.lt.s32.totalorder %s209, 1
      %s213 = scalar_select %p212, %s209, 1
      %s214 = smul.addr %s211, 2
      %s215 = sadd.s32 %s213, %s214
      %s216 = scalar_lea.vmem %s1, %s215
      %p217 = pneg %p89
      %p218 = pneg %p86
      %p219 = pneg %p119
      %p220 = pneg %p116
      %s221 = sadd.s32 %s21, %s22
      %p222 = scmp.lt.s32.totalorder %s20, 1
      %s223 = scalar_select %p222, %s20, 1
      %p224 = scmp.lt.s32.totalorder %s221, 1
      %s225 = scalar_select %p224, %s221, 1
      %s226 = smul.addr %s223, 2
      %s227 = sadd.s32 %s225, %s226
      %s228 = scalar_lea.vmem %s2, %s227
      %p229 = pneg %p147
      %p230 = pneg %p144
      %p231 = scmp.lt.s32.totalorder %s20, 1
      %s232 = scalar_select %p231, %s20, 1
      %p233 = scmp.lt.s32.totalorder %s21, 1
      %s234 = scalar_select %p233, %s21, 1
      %s235 = smul.addr %s232, 2
      %s236 = sadd.s32 %s234, %s235
      %s237 = smul.addr %s236, 4
      %s238 = scalar_lea.vmem %s3, %s237
      %s239 = sadd.s32 %s21, %s22
      %p240 = scmp.lt.s32.totalorder %s20, 1
      %s241 = scalar_select %p240, %s20, 1
      %p242 = scmp.lt.s32.totalorder %s239, 1
      %s243 = scalar_select %p242, %s239, 1
      %s244 = smul.addr %s241, 2
      %s245 = sadd.s32 %s243, %s244
      %s246 = smul.addr %s245, 2
      %s247 = scalar_lea.vmem %s0, %s246
      %s248 = sadd.s32 %s21, %s22
      %s249 = sadd.s32 %s21, %s22
      %p250 = scmp.lt.s32.totalorder %s20, 1
      %s251 = scalar_select %p250, %s20, 1
      %p252 = scmp.lt.s32.totalorder %s249, 1
      %s253 = scalar_select %p252, %s249, 1
      %s254 = smul.addr %s251, 2
      %s255 = sadd.s32 %s253, %s254
      %s256 = scalar_lea.vmem %s1, %s255
      %s257 = sadd.s32 %s21, %s22
      %s258 = sadd.s32 %s21, %s22
      %p259 = scmp.lt.s32.totalorder %s20, 1
      %s260 = scalar_select %p259, %s20, 1
      %p261 = scmp.lt.s32.totalorder %s258, 1
      %s262 = scalar_select %p261, %s258, 1
      %s263 = smul.addr %s260, 2
      %s264 = sadd.s32 %s262, %s263
      %s265 = scalar_lea.vmem %s2, %s264
      %s266 = sadd.s32 %s21, %s22
      %p267 = scmp.lt.s32.totalorder %s20, 1
      %s268 = scalar_select %p267, %s20, 1
      %p269 = scmp.lt.s32.totalorder %s21, 1
      %s270 = scalar_select %p269, %s21, 1
      %s271 = smul.addr %s268, 2
      %s272 = sadd.s32 %s270, %s271
      %s273 = smul.addr %s272, 4
      %s274 = scalar_lea.vmem %s3, %s273
      %p275 = scmp.eq.s32.totalorder %s22, 0
      // Predicated region
      $region29: #{blob_loss.2} parent=27 // pred_check
        %p276 = pneg %p275
      $region30: #{blob_loss.2} parent=27 // pred_check_branch
        %278 = sbr.rel (%p276) target = $region32
      $region31: #{blob_loss.2} parent=27 // pred_region
        %vm279 = vcmask 3072
        %280 = vst.msk [vmem:[#allocation2] sm:$0xf] %vm279, 0.0
        %281 = vst.msk [vmem:[#allocation2 + $0x4] sm:$0xf] %vm279, 0.0
        %282 = vst.msk [vmem:[#allocation2 + $0x8] sm:$0xf] %vm279, 0.0
        %283 = vst.msk [vmem:[#allocation2 + $0xc] sm:$0xf] %vm279, 0.0
        %284 = vst.msk [vmem:[#allocation2 + $0x10] sm:$0xf] %vm279, 0.0
        %285 = vst.msk [vmem:[#allocation2 + $0x14] sm:$0xf] %vm279, 0.0
        %286 = vst.msk [vmem:[#allocation2 + $0x18] sm:$0xf] %vm279, 0.0
        %287 = vst.msk [vmem:[#allocation2 + $0x1c] sm:$0xf] %vm279, 0.0
      $region32: #{blob_loss.2} parent=27 // pred_fallthru
        _
      %v288 = vld [vmem:[%s247] sm:$0x3]
      %v289 = vunpack.c.l.bf16 %v288
      %v290 = vld [vmem:[%s256] sm:$0x1]
      %vm291 = vcmp.ne.s32.totalorder %v290, 4294967295
      %vm292 = vcmp.ne.s32.totalorder %v290, 255
      %vm293 = vmand %vm291, %vm292
      %v294 = vsel %vm293, 1, 0
      %v295 = vcvt.s32.f32 %v294
      %v296 = vsel %vm291, 1, 0
      %v297 = vcvt.s32.f32 %v296
      %v298 = vsel %vm293, %v290, 0
      %v299 = vlaneseq
      %v300 = vshrl.u32 %v299, 7
      %v301 = vperm.slane %v298, 0
      %vm302 = vcmp.eq.s32.totalorder %v300, %v301
      %v303 = vsel %vm302, 1, 0
      %v304 = vcvt.s32.f32 %v303
      %vm305 = vcmask 1043456
      %v306 = vsel %vm305, %v289, -inf
      %v307 = vrot.slane %v306, 4
      %v308 = vmax.f32 %v306, %v307
      %v309 = vrot.slane %v308, 2
      %v310 = vmax.f32 %v308, %v309
      %v311 = vrot.slane %v310, 1
      %v312 = vmax.f32 %v310, %v311
      %v313 = vsub.f32 %v289, %v312
      %v314 = vmul.f32 %v313, 1.442695
      %v315 = vpow.pop %v314
      %v316 = vsel %vm305, %v315, 0.0
      %v317 = vrot.slane %v316, 4
      %v318 = vadd.f32 %v316, %v317
      %v319 = vrot.slane %v318, 2
      %v320 = vadd.f32 %v318, %v319
      %v321 = vrot.slane %v320, 1
      %v322 = vadd.f32 %v320, %v321
      %v323 = vlog2.pop %v322
      %v324 = vmul.f32 %v323, 0.6931472
      %v325 = vadd.f32 %v312, %v324
      %v326 = vmul.f32 %v304, %v289
      %v327 = vsel %vm305, %v326, 0.0
      %v328 = vrot.slane %v327, 4
      %v329 = vadd.f32 %v327, %v328
      %v330 = vrot.slane %v329, 2
      %v331 = vadd.f32 %v329, %v330
      %v332 = vrot.slane %v331, 1
      %v333 = vadd.f32 %v331, %v332
      %v334 = vsub.f32 %v333, %v325
      %v335 = vsub.f32 0.0, %v334
      %v336 = vmul.f32 %v334, 1.442695
      %v337 = vpow.pop %v336
      %vm338 = vcmp.eq.f32.partialorder %v289, %v312
      %v339 = vsel %vm338, %v300, 4
      %v340 = vsel %vm305, %v339, 2147483647
      %v341 = vrot.slane %v340, 4
      %vm342 = vcmp.lt.s32.totalorder %v340, %v341
      %v343 = vsel %vm342, %v340, %v341
      %v344 = vrot.slane %v343, 2
      %vm345 = vcmp.lt.s32.totalorder %v343, %v344
      %v346 = vsel %vm345, %v343, %v344
      %v347 = vrot.slane %v346, 1
      %vm348 = vcmp.lt.s32.totalorder %v346, %v347
      %v349 = vsel %vm348, %v346, %v347
      %vm350 = vcmp.eq.s32.totalorder %v300, %v349
      %v351 = vsel %vm350, 1, 0
      %v352 = vcvt.s32.f32 %v351
      %v353 = vsub.f32 1.0, %v304
      %v354 = vmul.f32 %v352, %v353
      %vm355 = vcmp.ne.f32.partialorder %v335, 0.0
      %vm356 = vmand %vm293, %vm355
      %v357 = vsel %vm356, 1, 0
      %v358 = vcvt.s32.f32 %v357
      %v359 = vmul.f32 %v358, %v335
      %v360 = vld [vmem:[#allocation2] sm:$0xf]
      %v362 = vperm.slane %v359, 0
      %v364 = vmul.f32 %v304, %v362
      %v365 = vsel %vm305, %v364, 0.0
      %366 = vadd.xlane.f32.xlu0 %v365
      %v367 = vpop.xlane.xlu0 %366
      %v368 = vadd.f32 %v360, %v367
      %vm369 = vcmask 3072
      %370 = vst.msk [vmem:[#allocation2] sm:$0xf] %vm369, %v368
      %s371 = scalar_lea.vmem [#allocation2], 4
      %v372 = vld [vmem:[%s371] sm:$0xf]
      %v374 = vperm.slane %v358, 0
      %v376 = vmul.f32 %v304, %v374
      %v377 = vsel %vm305, %v376, 0.0
      %378 = vadd.xlane.f32.xlu0 %v377
      %v379 = vpop.xlane.xlu0 %378
      %v380 = vadd.f32 %v372, %v379
      %381 = vst.msk [vmem:[%s371] sm:$0xf] %vm369, %v380
      %s382 = scalar_lea.vmem [#allocation2], 8
      %v383 = vld [vmem:[%s382] sm:$0xf]
      %v385 = vperm.slane %v297, 0
      %v387 = vmul.f32 %v304, %v385
      %v388 = vsel %vm305, %v387, 0.0
      %389 = vadd.xlane.f32.xlu0 %v388
      %v390 = vpop.xlane.xlu0 %389
      %v391 = vadd.f32 %v383, %v390
      %392 = vst.msk [vmem:[%s382] sm:$0xf] %vm369, %v391
      %s393 = scalar_lea.vmem [#allocation2], 12
      %v394 = vld [vmem:[%s393] sm:$0xf]
      %v395 = vmul.f32 %v354, %v362
      %v396 = vsel %vm305, %v395, 0.0
      %397 = vadd.xlane.f32.xlu0 %v396
      %v398 = vpop.xlane.xlu0 %397
      %v399 = vadd.f32 %v394, %v398
      %400 = vst.msk [vmem:[%s393] sm:$0xf] %vm369, %v399
      %s401 = scalar_lea.vmem [#allocation2], 16
      %v402 = vld [vmem:[%s401] sm:$0xf]
      %v403 = vmul.f32 %v354, %v374
      %v404 = vsel %vm305, %v403, 0.0
      %405 = vadd.xlane.f32.xlu0 %v404
      %v406 = vpop.xlane.xlu0 %405
      %v407 = vadd.f32 %v402, %v406
      %408 = vst.msk [vmem:[%s401] sm:$0xf] %vm369, %v407
      %s409 = scalar_lea.vmem [#allocation2], 20
      %v410 = vld [vmem:[%s409] sm:$0xf]
      %v411 = vmul.f32 %v354, %v385
      %v412 = vsel %vm305, %v411, 0.0
      %413 = vadd.xlane.f32.xlu0 %v412
      %v414 = vpop.xlane.xlu0 %413
      %v415 = vadd.f32 %v410, %v414
      %416 = vst.msk [vmem:[%s409] sm:$0xf] %vm369, %v415
      %s417 = scalar_lea.vmem [#allocation2], 24
      %v418 = vld [vmem:[%s417] sm:$0xf]
      %v419 = vsel %vm293, %v337, 0.0
      %vm420 = vcmask 1040384
      %v421 = vsel %vm420, %v419, 0.0
      %422 = vadd.xlane.f32.xlu0 %v421
      %v423 = vpop.xlane.xlu0 %422
      %v424 = vperm.slane %v423, 0
      %v425 = vadd.f32 %v418, %v424
      %426 = vst.msk [vmem:[%s417] sm:$0xf] %vm369, %v425
      %s427 = scalar_lea.vmem [#allocation2], 28
      %v428 = vld [vmem:[%s427] sm:$0xf]
      %v429 = vsel %vm420, %v295, 0.0
      %430 = vadd.xlane.f32.xlu0 %v429
      %v431 = vpop.xlane.xlu0 %430
      %v432 = vperm.slane %v431, 0
      %v433 = vadd.f32 %v428, %v432
      %434 = vst.msk [vmem:[%s427] sm:$0xf] %vm369, %v433
      %v435 = vsel %vm293, %v334, 1.0
      %436 = vst [vmem:[%s265] sm:$0x1] %v435
      // Predicated region
      $region33: #{blob_loss.2} parent=27 // pred_check
        %p437 = pneg %p275
      $region34: #{blob_loss.2} parent=27 // pred_check_branch
        %439 = sbr.rel (%p437) target = $region36
      $region35: #{blob_loss.2} parent=27 // pred_region
        %v440 = vld [vmem:[#allocation2] sm:$0xf]
        %v441 = vld [vmem:[%s371] sm:$0xf]
        %v442 = vld [vmem:[%s382] sm:$0xf]
        %v443 = vld [vmem:[%s393] sm:$0xf]
        %v444 = vld [vmem:[%s401] sm:$0xf]
        %v445 = vld [vmem:[%s409] sm:$0xf]
        %v446 = vld [vmem:[%s417] sm:$0xf]
        %v447 = vld [vmem:[%s427] sm:$0xf]
        %449 = vrot.lane.b32.xlu0 %v441, 1
        %v450 = vpop.permute.xlu0 %449
        %453 = vrot.lane.b32.xlu0 %v442, 2
        %v454 = vpop.permute.xlu0 %453
        %457 = vrot.lane.b32.xlu0 %v443, 3
        %v458 = vpop.permute.xlu0 %457
        %461 = vrot.lane.b32.xlu0 %v444, 4
        %v462 = vpop.permute.xlu0 %461
        %465 = vrot.lane.b32.xlu0 %v445, 5
        %v466 = vpop.permute.xlu0 %465
        %469 = vrot.lane.b32.xlu0 %v446, 6
        %v470 = vpop.permute.xlu0 %469
        %473 = vrot.lane.b32.xlu0 %v447, 7
        %v474 = vpop.permute.xlu0 %473
        %vm476 = vcmask 7168
        %v477 = vsel %vm476, %v440, %v450
        %vm478 = vcmask 15360
        %v479 = vsel %vm478, %v477, %v454
        %vm480 = vcmask 23552
        %v481 = vsel %vm480, %v479, %v458
        %vm482 = vcmask 31744
        %v483 = vsel %vm482, %v481, %v462
        %vm484 = vcmask 39936
        %v485 = vsel %vm484, %v483, %v466
        %vm486 = vcmask 48128
        %v487 = vsel %vm486, %v485, %v470
        %vm488 = vcmask 56320
        %v489 = vsel %vm488, %v487, %v474
        %vm490 = vcmask 64512
        %v491 = vsel %vm490, %v489, 0.0
        %492 = vst [vmem:[%s274] sm:$0xf] %v491
      $region36: #{blob_loss.2} parent=27 // pred_fallthru
        _
      %s493 = sadd.s32 %s21, %s22
      %p494 = scmp.lt.s32.totalorder %s20, 1
      %s495 = scalar_select %p494, %s20, 1
      %p496 = scmp.lt.s32.totalorder %s493, 1
      %s497 = scalar_select %p496, %s493, 1
      %s498 = smul.addr %s495, 2
      %s499 = sadd.s32 %s497, %s498
      %s500 = scalar_lea.vmem %s2, %s499
      %p501 = scmp.lt.s32.totalorder %s20, 1
      %s502 = scalar_select %p501, %s20, 1
      %p503 = scmp.lt.s32.totalorder %s21, 1
      %s504 = scalar_select %p503, %s21, 1
      %s505 = smul.addr %s502, 2
      %s506 = sadd.s32 %s504, %s505
      %s507 = smul.addr %s506, 4
      %s508 = scalar_lea.vmem %s3, %s507
      // Predicated region
      $region37: #{blob_loss.2} parent=27 // pred_check
        %p509 = pneg %p116
      $region38: #{blob_loss.2} parent=27 // pred_check_branch
        %511 = sbr.rel (%p509) target = $region40
      $region39: #{blob_loss.2} parent=27 // pred_region
        %s512 = sadd.s32 %s21, %s22
      $region40: #{blob_loss.2} parent=27 // pred_fallthru
        _
      // Predicated region
      $region41: #{blob_loss.2} parent=27 // pred_check
        %p513 = pneg %p144
      $region42: #{blob_loss.2} parent=27 // pred_check_branch
        %515 = sbr.rel (%p513) target = $region44
      $region43: #{blob_loss.2} parent=27 // pred_region
        _
      $region44: #{blob_loss.2} parent=27 // pred_fallthru
        _
    $region28: #{blob_loss.2} parent=5 // pred_fallthru
      _
    %p516 = scmp.le.s32.totalorder 2, %s10
    // Predicated region
    $region45: #{blob_loss.2} parent=5 // pred_check
      %p517 = pneg %p516
    $region46: #{blob_loss.2} parent=5 // pred_check_branch
      %519 = sbr.rel (%p517) target = $region48
    $region47: #{blob_loss.2} parent=5 // pred_region
      %s520 = ssub.s32 %s10, 2
      // Predicated region
      $region49: #{blob_loss.2} parent=47 // pred_check
        %p521 = pneg %p122
      $region50: #{blob_loss.2} parent=47 // pred_check_branch
        %523 = sbr.rel (%p521) target = $region52
      $region51: #{blob_loss.2} parent=47 // pred_region
        %s524 = sadd.s32 %s24, %s25
        %p525 = scmp.lt.s32.totalorder %s23, 1
        %s526 = scalar_select %p525, %s23, 1
        %p527 = scmp.lt.s32.totalorder %s524, 1
        %s528 = scalar_select %p527, %s524, 1
        %s529 = smul.addr %s526, 2
        %s530 = sadd.s32 %s528, %s529
        %s531 = scalar_lea.vmem %s2, %s530
      $region52: #{blob_loss.2} parent=47 // pred_fallthru
        _
      // Predicated region
      $region53: #{blob_loss.2} parent=47 // pred_check
        %p532 = pneg %p150
      $region54: #{blob_loss.2} parent=47 // pred_check_branch
        %534 = sbr.rel (%p532) target = $region56
      $region55: #{blob_loss.2} parent=47 // pred_region
        %p535 = scmp.lt.s32.totalorder %s23, 1
        %s536 = scalar_select %p535, %s23, 1
        %p537 = scmp.lt.s32.totalorder %s24, 1
        %s538 = scalar_select %p537, %s24, 1
        %s539 = smul.addr %s536, 2
        %s540 = sadd.s32 %s538, %s539
        %s541 = smul.addr %s540, 4
        %s542 = scalar_lea.vmem %s3, %s541
      $region56: #{blob_loss.2} parent=47 // pred_fallthru
        _
    $region48: #{blob_loss.2} parent=5 // pred_fallthru
      _
  $region6: #{blob_loss.2} parent=0 // loop_footer
    %s14 = sadd.s32 1, %s10
  $region7: #{blob_loss.2} parent=0 // loop_footer_branch
    %9 = sbr.rel target = $region3
  $region8: #{blob_loss.2} parent=0 // loop_exit
    _

</llo_original>
